<compile_context>
chip_gen: v5e
topology: v5e:2x2
jax: 0.10.0
libtpu: 0.0.40
codegen_flags: <defaults>
</compile_context>

<pallas_src>
import jax
import jax.numpy as jnp
from jax.experimental import pallas as pl
from jax.experimental.pallas import tpu as pltpu

H = 128  # padded hidden / lane width


def mlp_kernel(x_ref, w1_ref, w2_ref, w3_ref, w4_ref, b_ref, out_ref):
    # bf16 operands on the MXU, f32 accumulation + f32 epilogue.
    x = x_ref[...].astype(jnp.bfloat16)
    b = b_ref[...]                                            # [4, 128] f32

    h = jnp.dot(x, w1_ref[...], preferred_element_type=jnp.float32) + b[0:1, :]
    h = jnp.maximum(h, 0.0).astype(jnp.bfloat16)              # ReLU

    h = jnp.dot(h, w2_ref[...], preferred_element_type=jnp.float32) + b[1:2, :]
    h = jnp.maximum(h, 0.0).astype(jnp.bfloat16)              # ReLU

    h = jnp.dot(h, w3_ref[...], preferred_element_type=jnp.float32) + b[2:3, :]
    h = jnp.maximum(h, 0.0).astype(jnp.bfloat16)              # ReLU

    logits = jnp.dot(h, w4_ref[...], preferred_element_type=jnp.float32) + b[3:4, :]
    out_ref[...] = jax.nn.sigmoid(logits).astype(out_ref.dtype)  # Sigmoid


def _prepare_padded_params(params, input_size):
    """Zero-pad hidden dims 64->128 and the output dim 1->128; weights -> bf16."""
    f32 = jnp.float32
    w1 = jnp.zeros((input_size, H), f32).at[:, :64].set(params["w1"])
    w2 = jnp.zeros((H, H), f32).at[:64, :].set(params["w2"])
    w3 = jnp.zeros((H, H), f32).at[:, :64].set(params["w3"])
    w4 = jnp.zeros((H, H), f32).at[:64, :1].set(params["w4"])

    b = jnp.zeros((4, H), f32)
    b = b.at[0, :64].set(params["b1"][0])
    b = b.at[1, :].set(params["b2"][0])
    b = b.at[2, :64].set(params["b3"][0])
    b = b.at[3, :1].set(params["b4"][0])

    bf16 = jnp.bfloat16
    return w1.astype(bf16), w2.astype(bf16), w3.astype(bf16), w4.astype(bf16), b


def mlp_classifier_forward(x, params, *, tile_b=512):
    """x: [B, input_size] f32. params: dict of [in, out] weights + (1, out) biases."""
    B, F = x.shape

    # Batch tile: multiple of 8 (sublane), capped by tile_b, sized so every
    # grid step is a full tile (pad the batch with zero rows, sliced off below).
    tb = tile_b
    if B < tb:
        tb = max(8, -(-B // 8) * 8)
    num_tiles = pl.cdiv(B, tb)
    B_pad = num_tiles * tb
    if B_pad != B:
        x = jnp.pad(x, ((0, B_pad - B), (0, 0)))

    w1, w2, w3, w4, b = _prepare_padded_params(params, F)

    flops = 2 * B_pad * (F * H + 3 * H * H)
    bytes_accessed = (B_pad * F * 4            # x in
                      + (F * H + 3 * H * H) * 2  # bf16 weights
                      + 4 * H * 4              # biases
                      + B_pad * H * 4)         # padded output
    cost = pl.CostEstimate(flops=flops,
                           transcendentals=B_pad * H,
                           bytes_accessed=bytes_accessed)

    out = pl.pallas_call(
        mlp_kernel,
        out_shape=jax.ShapeDtypeStruct((B_pad, H), jnp.float32),
        grid=(num_tiles,),
        in_specs=[
            pl.BlockSpec((tb, F), lambda i: (i, 0)),   # x: streamed per tile
            pl.BlockSpec((F, H), lambda i: (0, 0)),    # w1: resident
            pl.BlockSpec((H, H), lambda i: (0, 0)),    # w2: resident
            pl.BlockSpec((H, H), lambda i: (0, 0)),    # w3: resident
            pl.BlockSpec((H, H), lambda i: (0, 0)),    # w4: resident
            pl.BlockSpec((4, H), lambda i: (0, 0)),    # stacked biases: resident
        ],
        out_specs=pl.BlockSpec((tb, H), lambda i: (i, 0)),
        compiler_params=pltpu.CompilerParams(
            dimension_semantics=("parallel",),
            vmem_limit_bytes=32 * 1024 * 1024,
        ),
        cost_estimate=cost,
    )(x, w1, w2, w3, w4, b)

    return out[:B, :1]


def init_params(key, input_size):
    """Deterministic init. Weights stored as [in, out] (transposed vs torch)."""
    ks = jax.random.split(key, 8)

    def linear(kw, kb, fan_in, fan_out):
        bound = 1.0 / jnp.sqrt(fan_in)
        w = jax.random.uniform(kw, (fan_in, fan_out), jnp.float32, -bound, bound)
        b = jax.random.uniform(kb, (1, fan_out), jnp.float32, -bound, bound)
        return w, b

    w1, b1 = linear(ks[0], ks[1], input_size, 64)
    w2, b2 = linear(ks[2], ks[3], 64, 128)
    w3, b3 = linear(ks[4], ks[5], 128, 64)
    w4, b4 = linear(ks[6], ks[7], 64, 1)
    return dict(w1=w1, b1=b1, w2=w2, b2=b2, w3=w3, b3=b3, w4=w4, b4=b4)


def reference_forward_f32(x, p):
    h = jnp.maximum(x @ p["w1"] + p["b1"], 0.0)
    h = jnp.maximum(h @ p["w2"] + p["b2"], 0.0)
    h = jnp.maximum(h @ p["w3"] + p["b3"], 0.0)
    return jax.nn.sigmoid(h @ p["w4"] + p["b4"])


def reference_forward_bf16(x, p):
    # Mirrors the kernel's quantization: bf16 dot operands, f32 accum/epilogue.
    def q(a):
        return a.astype(jnp.bfloat16).astype(jnp.float32)
    h = jnp.maximum(jnp.dot(q(x), q(p["w1"])) + p["b1"], 0.0)
    h = jnp.maximum(jnp.dot(q(h), q(p["w2"])) + p["b2"], 0.0)
    h = jnp.maximum(jnp.dot(q(h), q(p["w3"])) + p["b3"], 0.0)
    return jax.nn.sigmoid(jnp.dot(q(h), q(p["w4"])) + p["b4"])


if __name__ == "__main__":
    key = jax.random.PRNGKey(0)
    k_x, k_p = jax.random.split(key)

    batch = 8
    input_size = 32
    x = jax.random.normal(k_x, (batch, input_size), jnp.float32)
    params = init_params(k_p, input_size)

    out = mlp_classifier_forward(x, params)
    out = jax.block_until_ready(out)

    assert out.shape == (batch, 1), out.shape

    ref_q = reference_forward_bf16(x, params)
    assert jnp.allclose(out, ref_q, atol=2e-3, rtol=2e-3), (
        "mismatch vs bf16-precision reference")

    ref_f32 = reference_forward_f32(x, params)
    assert jnp.allclose(out, ref_f32, atol=5e-2, rtol=0), (
        "mismatch vs f32 reference")

    print("KERNEL_OK")
</pallas_src>

<mosaic_0001>
module attributes {stable_mosaic.version = 11 : i64} {
  func.func @mlp_kernel(%arg0: i32, %arg1: memref<8x32xf32, #tpu.memory_space<vmem>>, %arg2: memref<32x128xbf16, #tpu.memory_space<vmem>>, %arg3: memref<128x128xbf16, #tpu.memory_space<vmem>>, %arg4: memref<128x128xbf16, #tpu.memory_space<vmem>>, %arg5: memref<128x128xbf16, #tpu.memory_space<vmem>>, %arg6: memref<4x128xf32, #tpu.memory_space<vmem>>, %arg7: memref<8x128xf32, #tpu.memory_space<vmem>>) attributes {dimension_semantics = [#tpu.dimension_semantics<parallel>], iteration_bounds = array<i64: 1>, scalar_prefetch = 0 : i64, scratch_operands = 0 : i64, tpu.core_type = #tpu.core_type<tc>, window_params = [{transform_indices = @transform_0, window_bounds = array<i64: 8, 32>}, {pipeline_mode = #tpu.pipeline_mode<synchronous>, transform_indices = @transform_1, window_bounds = array<i64: 32, 128>}, {pipeline_mode = #tpu.pipeline_mode<synchronous>, transform_indices = @transform_2, window_bounds = array<i64: 128, 128>}, {pipeline_mode = #tpu.pipeline_mode<synchronous>, transform_indices = @transform_3, window_bounds = array<i64: 128, 128>}, {pipeline_mode = #tpu.pipeline_mode<synchronous>, transform_indices = @transform_4, window_bounds = array<i64: 128, 128>}, {pipeline_mode = #tpu.pipeline_mode<synchronous>, transform_indices = @transform_5, window_bounds = array<i64: 4, 128>}, {transform_indices = @transform_6, window_bounds = array<i64: 8, 128>}]} {
    %c0 = arith.constant 0 : index
    %c0_0 = arith.constant 0 : index
    %0 = vector.load %arg1[%c0, %c0_0] : memref<8x32xf32, #tpu.memory_space<vmem>>, vector<8x32xf32>
    %1 = arith.truncf %0 : vector<8x32xf32> to vector<8x32xbf16>
    %c0_1 = arith.constant 0 : index
    %c0_2 = arith.constant 0 : index
    %2 = vector.load %arg6[%c0_1, %c0_2] : memref<4x128xf32, #tpu.memory_space<vmem>>, vector<4x128xf32>
    %c0_3 = arith.constant 0 : index
    %c0_4 = arith.constant 0 : index
    %3 = vector.load %arg2[%c0_3, %c0_4] : memref<32x128xbf16, #tpu.memory_space<vmem>>, vector<32x128xbf16>
    %cst = arith.constant dense<0.000000e+00> : vector<8x128xf32>
    %4 = tpu.matmul %1, %3, %cst {dimension_numbers = #tpu.dot_dimension_numbers<[1], [0], [0], [1], [0, 0, 1, 1], [], []>} : vector<8x32xbf16>, vector<32x128xbf16>, vector<8x128xf32> -> vector<8x128xf32>
    %5 = vector.extract_strided_slice %2 {offsets = [0, 0], sizes = [1, 128], strides = [1, 1]} : vector<4x128xf32> to vector<1x128xf32>
    %6 = vector.broadcast %5 : vector<1x128xf32> to vector<8x128xf32>
    %7 = arith.addf %4, %6 : vector<8x128xf32>
    %cst_5 = arith.constant 0.000000e+00 : f32
    %8 = vector.broadcast %cst_5 : f32 to vector<8x128xf32>
    %9 = arith.maximumf %7, %8 : vector<8x128xf32>
    %10 = arith.truncf %9 : vector<8x128xf32> to vector<8x128xbf16>
    %c0_6 = arith.constant 0 : index
    %c0_7 = arith.constant 0 : index
    %11 = vector.load %arg3[%c0_6, %c0_7] : memref<128x128xbf16, #tpu.memory_space<vmem>>, vector<128x128xbf16>
    %cst_8 = arith.constant dense<0.000000e+00> : vector<8x128xf32>
    %12 = tpu.matmul %10, %11, %cst_8 {dimension_numbers = #tpu.dot_dimension_numbers<[1], [0], [0], [1], [0, 0, 1, 1], [], []>} : vector<8x128xbf16>, vector<128x128xbf16>, vector<8x128xf32> -> vector<8x128xf32>
    %13 = vector.extract_strided_slice %2 {offsets = [1, 0], sizes = [1, 128], strides = [1, 1]} : vector<4x128xf32> to vector<1x128xf32>
    %14 = vector.broadcast %13 : vector<1x128xf32> to vector<8x128xf32>
    %15 = arith.addf %12, %14 : vector<8x128xf32>
    %cst_9 = arith.constant 0.000000e+00 : f32
    %16 = vector.broadcast %cst_9 : f32 to vector<8x128xf32>
    %17 = arith.maximumf %15, %16 : vector<8x128xf32>
    %18 = arith.truncf %17 : vector<8x128xf32> to vector<8x128xbf16>
    %c0_10 = arith.constant 0 : index
    %c0_11 = arith.constant 0 : index
    %19 = vector.load %arg4[%c0_10, %c0_11] : memref<128x128xbf16, #tpu.memory_space<vmem>>, vector<128x128xbf16>
    %cst_12 = arith.constant dense<0.000000e+00> : vector<8x128xf32>
    %20 = tpu.matmul %18, %19, %cst_12 {dimension_numbers = #tpu.dot_dimension_numbers<[1], [0], [0], [1], [0, 0, 1, 1], [], []>} : vector<8x128xbf16>, vector<128x128xbf16>, vector<8x128xf32> -> vector<8x128xf32>
    %21 = vector.extract_strided_slice %2 {offsets = [2, 0], sizes = [1, 128], strides = [1, 1]} : vector<4x128xf32> to vector<1x128xf32>
    %22 = vector.broadcast %21 : vector<1x128xf32> to vector<8x128xf32>
    %23 = arith.addf %20, %22 : vector<8x128xf32>
    %cst_13 = arith.constant 0.000000e+00 : f32
    %24 = vector.broadcast %cst_13 : f32 to vector<8x128xf32>
    %25 = arith.maximumf %23, %24 : vector<8x128xf32>
    %26 = arith.truncf %25 : vector<8x128xf32> to vector<8x128xbf16>
    %c0_14 = arith.constant 0 : index
    %c0_15 = arith.constant 0 : index
    %27 = vector.load %arg5[%c0_14, %c0_15] : memref<128x128xbf16, #tpu.memory_space<vmem>>, vector<128x128xbf16>
    %cst_16 = arith.constant dense<0.000000e+00> : vector<8x128xf32>
    %28 = tpu.matmul %26, %27, %cst_16 {dimension_numbers = #tpu.dot_dimension_numbers<[1], [0], [0], [1], [0, 0, 1, 1], [], []>} : vector<8x128xbf16>, vector<128x128xbf16>, vector<8x128xf32> -> vector<8x128xf32>
    %29 = vector.extract_strided_slice %2 {offsets = [3, 0], sizes = [1, 128], strides = [1, 1]} : vector<4x128xf32> to vector<1x128xf32>
    %30 = vector.broadcast %29 : vector<1x128xf32> to vector<8x128xf32>
    %31 = arith.addf %28, %30 : vector<8x128xf32>
    %32 = arith.negf %31 : vector<8x128xf32>
    %33 = math.exp %32 : vector<8x128xf32>
    %cst_17 = arith.constant 1.000000e+00 : f32
    %34 = vector.broadcast %cst_17 : f32 to vector<8x128xf32>
    %35 = arith.addf %34, %33 : vector<8x128xf32>
    %36 = arith.divf %34, %35 : vector<8x128xf32>
    %c0_18 = arith.constant 0 : index
    %c0_19 = arith.constant 0 : index
    %37 = vector.load %arg7[%c0_18, %c0_19] : memref<8x128xf32, #tpu.memory_space<vmem>>, vector<8x128xf32>
    tpu.vector_store %arg7[%c0_18, %c0_19], %36 {strides = array<i32>} : memref<8x128xf32, #tpu.memory_space<vmem>>, vector<8x128xf32>,
    return
  }
  func.func @transform_0(%arg0: i32) -> (i32, i32) {
    %c0_i32 = arith.constant 0 : i32
    %c0_i32_0 = arith.constant 0 : i32
    return %arg0, %c0_i32 : i32, i32
  }
  func.func @transform_1(%arg0: i32) -> (i32, i32) {
    %c0_i32 = arith.constant 0 : i32
    %c0_i32_0 = arith.constant 0 : i32
    %c0_i32_1 = arith.constant 0 : i32
    return %c0_i32, %c0_i32_0 : i32, i32
  }
  func.func @transform_2(%arg0: i32) -> (i32, i32) {
    %c0_i32 = arith.constant 0 : i32
    %c0_i32_0 = arith.constant 0 : i32
    %c0_i32_1 = arith.constant 0 : i32
    return %c0_i32, %c0_i32_0 : i32, i32
  }
  func.func @transform_3(%arg0: i32) -> (i32, i32) {
    %c0_i32 = arith.constant 0 : i32
    %c0_i32_0 = arith.constant 0 : i32
    %c0_i32_1 = arith.constant 0 : i32
    return %c0_i32, %c0_i32_0 : i32, i32
  }
  func.func @transform_4(%arg0: i32) -> (i32, i32) {
    %c0_i32 = arith.constant 0 : i32
    %c0_i32_0 = arith.constant 0 : i32
    %c0_i32_1 = arith.constant 0 : i32
    return %c0_i32, %c0_i32_0 : i32, i32
  }
  func.func @transform_5(%arg0: i32) -> (i32, i32) {
    %c0_i32 = arith.constant 0 : i32
    %c0_i32_0 = arith.constant 0 : i32
    %c0_i32_1 = arith.constant 0 : i32
    return %c0_i32, %c0_i32_0 : i32, i32
  }
  func.func @transform_6(%arg0: i32) -> (i32, i32) {
    %c0_i32 = arith.constant 0 : i32
    %c0_i32_0 = arith.constant 0 : i32
    return %arg0, %c0_i32 : i32, i32
  }
}

</mosaic_0001>

<llo_original>
// kernel: tpu_custom_call.1
$region0: #{tpu_custom_call.1}
  #allocation0 [shape = 'u32[]', space=smem, size = 0x4, offset = 0x4, fixed_abs, tag = 'smem constant byte address 0x4 - core index']
  #allocation1 [shape = 'u32[72,128]{1,0:T(1,128)}', space=vmem, size = 0x9000, scoped, tag = 'internal scratch']
  %s0 = inlined_call_operand.hbm [shape: f32[8,32], index: 0, kind: input, shape index: {}]
  %s1 = inlined_call_operand.hbm [shape: bf16[32,128], index: 1, kind: input, shape index: {}]
  %s2 = inlined_call_operand.hbm [shape: bf16[128,128], index: 2, kind: input, shape index: {}]
  %s3 = inlined_call_operand.hbm [shape: bf16[128,128], index: 3, kind: input, shape index: {}]
  %s4 = inlined_call_operand.hbm [shape: bf16[128,128], index: 4, kind: input, shape index: {}]
  %s5 = inlined_call_operand.vmem [shape: f32[4,128], index: 5, kind: input, shape index: {}]
  %s6 = inlined_call_operand.hbm [shape: f32[8,128], index: 6, kind: output, shape index: {}]
  %s7 = sld [smem:[#allocation0]]
  $region54: #{tpu_custom_call.1} parent=0
    _
  %s9 = ssub.s32 1, %s7
  %s10 = scalar_select 0, %s9, %s7
  $region1: #{tpu_custom_call.1} parent=0
    #allocation2 [shape = 'u8[4096]{0}', space=vmem, size = 0x1000, scoped, tag = 'input window, operand 0, single buffered']
    #allocation3 [shape = 's32[1]{0}', space=sflag, size = 0x4, scoped, tag = 'scoped memory for tpu_custom_call.1']
    #allocation4 [shape = 's32[1]{0}', space=sflag, size = 0x4, scoped, tag = 'scoped memory for tpu_custom_call.1']
    #allocation5 [shape = 'u8[8192]{0}', space=vmem, size = 0x2000, scoped, tag = 'input window, operand 1, single buffered']
    #allocation6 [shape = 's32[1]{0}', space=sflag, size = 0x4, scoped, tag = 'scoped memory for tpu_custom_call.1']
    #allocation7 [shape = 'u8[32768]{0}', space=vmem, size = 0x8000, scoped, tag = 'input window, operand 2, single buffered']
    #allocation8 [shape = 'u8[32768]{0}', space=vmem, size = 0x8000, scoped, tag = 'input window, operand 3, single buffered']
    #allocation9 [shape = 's32[1]{0}', space=sflag, size = 0x4, scoped, tag = 'scoped memory for tpu_custom_call.1']
    #allocation10 [shape = 'u8[32768]{0}', space=vmem, size = 0x8000, scoped, tag = 'input window, operand 4, single buffered']
    #allocation11 [shape = 'u8[4096]{0}', space=vmem, size = 0x1000, scoped, tag = 'output window, operand 0, single buffered']
    %11 = vsyncpa [#allocation3], 0
    %12 = vsyncpa [#allocation6], 0
    %13 = vsyncpa [#allocation9], 0
    %14 = vsyncpa [#allocation4], 0
    // Predicated region
    $region2: #{tpu_custom_call.1} parent=1 // pred_check
      _
    $region3: #{tpu_custom_call.1} parent=1 // pred_check_branch
      %16 = sbr.rel (0) target = $region5
    $region4: #{tpu_custom_call.1} parent=1 // pred_region
      %18 = vsyncadd [#allocation3], 0
      %s20 = sshll.u32 %s0, 4
      %s21 = int_to_ptr.hbm [resolvable:$true] %s20
      %s22 = sshll.u32 [#allocation2], 4
      %s23 = int_to_ptr.vmem [resolvable:$true] %s22
      %25 = dma.hbm_to_vmem [thread:$0]  %s21, 128, %s23, [#allocation3]
    $region5: #{tpu_custom_call.1} parent=1 // pred_fallthru
      _
    // Predicated region
    $region6: #{tpu_custom_call.1} parent=1 // pred_check
      _
    $region7: #{tpu_custom_call.1} parent=1 // pred_check_branch
      %27 = sbr.rel (0) target = $region9
    $region8: #{tpu_custom_call.1} parent=1 // pred_region
      %29 = vsyncadd [#allocation6], 0
      %s30 = sshll.u32 %s1, 4
      %s31 = int_to_ptr.hbm [resolvable:$true] %s30
      %s32 = sshll.u32 [#allocation5], 4
      %s33 = int_to_ptr.vmem [resolvable:$true] %s32
      %38 = dma.hbm_to_vmem [thread:$0]  %s31, 256, %s33, [#allocation6], 64, 64, 4
    $region9: #{tpu_custom_call.1} parent=1 // pred_fallthru
      _
    // Predicated region
    $region10: #{tpu_custom_call.1} parent=1 // pred_check
      _
    $region11: #{tpu_custom_call.1} parent=1 // pred_check_branch
      %40 = sbr.rel (0) target = $region13
    $region12: #{tpu_custom_call.1} parent=1 // pred_region
      %42 = vsyncadd [#allocation6], 0
      %s43 = sshll.u32 %s2, 4
      %s44 = int_to_ptr.hbm [resolvable:$true] %s43
      %s45 = sshll.u32 [#allocation7], 4
      %s46 = int_to_ptr.vmem [resolvable:$true] %s45
      %51 = dma.hbm_to_vmem [thread:$0]  %s44, 1024, %s46, [#allocation6], 64, 64, 4
    $region13: #{tpu_custom_call.1} parent=1 // pred_fallthru
      _
    // Predicated region
    $region14: #{tpu_custom_call.1} parent=1 // pred_check
      _
    $region15: #{tpu_custom_call.1} parent=1 // pred_check_branch
      %53 = sbr.rel (0) target = $region17
    $region16: #{tpu_custom_call.1} parent=1 // pred_region
      %55 = vsyncadd [#allocation9], 0
      %s56 = sshll.u32 %s3, 4
      %s57 = int_to_ptr.hbm [resolvable:$true] %s56
      %s58 = sshll.u32 [#allocation8], 4
      %s59 = int_to_ptr.vmem [resolvable:$true] %s58
      %64 = dma.hbm_to_vmem [thread:$0]  %s57, 1024, %s59, [#allocation9], 64, 64, 4
    $region17: #{tpu_custom_call.1} parent=1 // pred_fallthru
      _
    // Predicated region
    $region18: #{tpu_custom_call.1} parent=1 // pred_check
      _
    $region19: #{tpu_custom_call.1} parent=1 // pred_check_branch
      %66 = sbr.rel (0) target = $region21
    $region20: #{tpu_custom_call.1} parent=1 // pred_region
      %68 = vsyncadd [#allocation9], 0
      %s69 = sshll.u32 %s4, 4
      %s70 = int_to_ptr.hbm [resolvable:$true] %s69
      %s71 = sshll.u32 [#allocation10], 4
      %s72 = int_to_ptr.vmem [resolvable:$true] %s71
      %77 = dma.hbm_to_vmem [thread:$0]  %s70, 1024, %s72, [#allocation9], 64, 64, 4
    $region21: #{tpu_custom_call.1} parent=1 // pred_fallthru
      _
    // Predicated region
    $region22: #{tpu_custom_call.1} parent=1 // pred_check
      _
    $region23: #{tpu_custom_call.1} parent=1 // pred_check_branch
      %79 = sbr.rel (0) target = $region25
    $region24: #{tpu_custom_call.1} parent=1 // pred_region
      _
    $region25: #{tpu_custom_call.1} parent=1 // pred_fallthru
      _
    // Predicated region
    $region26: #{tpu_custom_call.1} parent=1 // pred_check
      _
    $region27: #{tpu_custom_call.1} parent=1 // pred_check_branch
      %81 = sbr.rel (0) target = $region29
    $region28: #{tpu_custom_call.1} parent=1 // pred_region
      %83 = dma.done [#allocation3], 128
    $region29: #{tpu_custom_call.1} parent=1 // pred_fallthru
      _
    // Predicated region
    $region30: #{tpu_custom_call.1} parent=1 // pred_check
      _
    $region31: #{tpu_custom_call.1} parent=1 // pred_check_branch
      %85 = sbr.rel (0) target = $region33
    $region32: #{tpu_custom_call.1} parent=1 // pred_region
      %87 = dma.done [#allocation6], 256
    $region33: #{tpu_custom_call.1} parent=1 // pred_fallthru
      _
    // Predicated region
    $region34: #{tpu_custom_call.1} parent=1 // pred_check
      _
    $region35: #{tpu_custom_call.1} parent=1 // pred_check_branch
      %89 = sbr.rel (0) target = $region37
    $region36: #{tpu_custom_call.1} parent=1 // pred_region
      %91 = dma.done [#allocation6], 1024
    $region37: #{tpu_custom_call.1} parent=1 // pred_fallthru
      _
    // Predicated region
    $region38: #{tpu_custom_call.1} parent=1 // pred_check
      _
    $region39: #{tpu_custom_call.1} parent=1 // pred_check_branch
      %93 = sbr.rel (0) target = $region41
    $region40: #{tpu_custom_call.1} parent=1 // pred_region
      %95 = dma.done [#allocation9], 1024
    $region41: #{tpu_custom_call.1} parent=1 // pred_fallthru
      _
    // Predicated region
    $region42: #{tpu_custom_call.1} parent=1 // pred_check
      _
    $region43: #{tpu_custom_call.1} parent=1 // pred_check_branch
      %97 = sbr.rel (0) target = $region45
    $region44: #{tpu_custom_call.1} parent=1 // pred_region
      %99 = dma.done [#allocation9], 1024
    $region45: #{tpu_custom_call.1} parent=1 // pred_fallthru
      _
    %v101 = vld [vmem:[#allocation2] sm:$0xff]
    %v102 = vpack.c.bf16 %v101, %v101
    %v103 = vld [vmem:[%s5] sm:$0xf]
    %v104 = vld [vmem:[#allocation5] sm:$0xf]
    %v105 = vld [vmem:[#allocation5 + $0x4] sm:$0xf]
    %v106 = vld [vmem:[#allocation5 + $0x8] sm:$0xf]
    %v107 = vld [vmem:[#allocation5 + $0xc] sm:$0xf]
    %v108 = vperm.slane %v103, 0
    %v113 = vunpack.c.l.b16 %v104
    %v114 = vunpack.c.l.b16 %v105
    %v115 = vunpack.c.l.b16 %v106
    %v116 = vunpack.c.l.b16 %v107
    %v117 = vpack.c.b16 %v114, %v113
    %v118 = vpack.c.b16 %v116, %v115
    %vm121 = vcmask 261120
    %v123 = vsel %vm121, %v102, 0
    %125 = vmatpush.bf16.msra.mxu0 0
    %126 = vmatpush.bf16.msra.mxu0 0
    %127 = vmatpush.bf16.msra.mxu0 0
    %128 = vmatpush.bf16.msra.mxu0 0
    %129 = vmatpush.bf16.msra.mxu0 0
    %130 = vmatpush.bf16.msra.mxu0 0
    %131 = vmatpush.bf16.msra.mxu0 %v118
    %132 = vmatpush.bf16.msra.mxu0 %v117
    %133 = vmatmul.bf16.gmra.mxu0 %v123
    %v134 = vpop.f32.mrf.mxu0
    %v135 = vadd.f32 %v108, %v134
    %v136 = vpop.f32.mrf.mxu0
    %137 = vdwg.mxu0
    %v138 = vmax.f32 %v135, 0.0
    %v139 = vpack.c.bf16 %v138, %v138
    %v140 = vld [vmem:[#allocation7] sm:$0xf]
    %v141 = vld [vmem:[#allocation7 + $0x4] sm:$0xf]
    %v142 = vld [vmem:[#allocation7 + $0x8] sm:$0xf]
    %v143 = vld [vmem:[#allocation7 + $0xc] sm:$0xf]
    %v144 = vld [vmem:[#allocation7 + $0x10] sm:$0xf]
    %v145 = vld [vmem:[#allocation7 + $0x14] sm:$0xf]
    %v146 = vld [vmem:[#allocation7 + $0x18] sm:$0xf]
    %v147 = vld [vmem:[#allocation7 + $0x1c] sm:$0xf]
    %v148 = vld [vmem:[#allocation7 + $0x20] sm:$0xf]
    %v149 = vld [vmem:[#allocation7 + $0x24] sm:$0xf]
    %v150 = vld [vmem:[#allocation7 + $0x28] sm:$0xf]
    %v151 = vld [vmem:[#allocation7 + $0x2c] sm:$0xf]
    %v152 = vld [vmem:[#allocation7 + $0x30] sm:$0xf]
    %v153 = vld [vmem:[#allocation7 + $0x34] sm:$0xf]
    %v154 = vld [vmem:[#allocation7 + $0x38] sm:$0xf]
    %v155 = vld [vmem:[#allocation7 + $0x3c] sm:$0xf]
    %v156 = vperm.slane %v103, 1
    %v173 = vunpack.c.l.b16 %v140
    %v174 = vunpack.c.l.b16 %v141
    %v175 = vunpack.c.l.b16 %v142
    %v176 = vunpack.c.l.b16 %v143
    %v177 = vunpack.c.l.b16 %v144
    %v178 = vunpack.c.l.b16 %v145
    %v179 = vunpack.c.l.b16 %v146
    %v180 = vunpack.c.l.b16 %v147
    %v181 = vunpack.c.l.b16 %v148
    %v182 = vunpack.c.l.b16 %v149
    %v183 = vunpack.c.l.b16 %v150
    %v184 = vunpack.c.l.b16 %v151
    %v185 = vunpack.c.l.b16 %v152
    %v186 = vunpack.c.l.b16 %v153
    %v187 = vunpack.c.l.b16 %v154
    %v188 = vunpack.c.l.b16 %v155
    %v189 = vpack.c.b16 %v174, %v173
    %v190 = vpack.c.b16 %v176, %v175
    %v191 = vpack.c.b16 %v178, %v177
    %v192 = vpack.c.b16 %v180, %v179
    %v193 = vpack.c.b16 %v182, %v181
    %v194 = vpack.c.b16 %v184, %v183
    %v195 = vpack.c.b16 %v186, %v185
    %v196 = vpack.c.b16 %v188, %v187
    %205 = vmatpush.bf16.msra.mxu0 %v196
    %206 = vmatpush.bf16.msra.mxu0 %v195
    %207 = vmatpush.bf16.msra.mxu0 %v194
    %208 = vmatpush.bf16.msra.mxu0 %v193
    %209 = vmatpush.bf16.msra.mxu0 %v192
    %210 = vmatpush.bf16.msra.mxu0 %v191
    %211 = vmatpush.bf16.msra.mxu0 %v190
    %212 = vmatpush.bf16.msra.mxu0 %v189
    %213 = vmatmul.bf16.gmra.mxu0 %v139
    %v214 = vpop.f32.mrf.mxu0
    %v215 = vadd.f32 %v156, %v214
    %v216 = vpop.f32.mrf.mxu0
    %217 = vdwg.mxu0
    %v218 = vmax.f32 %v215, 0.0
    %v219 = vpack.c.bf16 %v218, %v218
    %v220 = vld [vmem:[#allocation8] sm:$0xf]
    %v221 = vld [vmem:[#allocation8 + $0x4] sm:$0xf]
    %v222 = vld [vmem:[#allocation8 + $0x8] sm:$0xf]
    %v223 = vld [vmem:[#allocation8 + $0xc] sm:$0xf]
    %v224 = vld [vmem:[#allocation8 + $0x10] sm:$0xf]
    %v225 = vld [vmem:[#allocation8 + $0x14] sm:$0xf]
    %v226 = vld [vmem:[#allocation8 + $0x18] sm:$0xf]
    %v227 = vld [vmem:[#allocation8 + $0x1c] sm:$0xf]
    %v228 = vld [vmem:[#allocation8 + $0x20] sm:$0xf]
    %v229 = vld [vmem:[#allocation8 + $0x24] sm:$0xf]
    %v230 = vld [vmem:[#allocation8 + $0x28] sm:$0xf]
    %v231 = vld [vmem:[#allocation8 + $0x2c] sm:$0xf]
    %v232 = vld [vmem:[#allocation8 + $0x30] sm:$0xf]
    %v233 = vld [vmem:[#allocation8 + $0x34] sm:$0xf]
    %v234 = vld [vmem:[#allocation8 + $0x38] sm:$0xf]
    %v235 = vld [vmem:[#allocation8 + $0x3c] sm:$0xf]
    %v236 = vperm.slane %v103, 2
    %v253 = vunpack.c.l.b16 %v220
    %v254 = vunpack.c.l.b16 %v221
    %v255 = vunpack.c.l.b16 %v222
    %v256 = vunpack.c.l.b16 %v223
    %v257 = vunpack.c.l.b16 %v224
    %v258 = vunpack.c.l.b16 %v225
    %v259 = vunpack.c.l.b16 %v226
    %v260 = vunpack.c.l.b16 %v227
    %v261 = vunpack.c.l.b16 %v228
    %v262 = vunpack.c.l.b16 %v229
    %v263 = vunpack.c.l.b16 %v230
    %v264 = vunpack.c.l.b16 %v231
    %v265 = vunpack.c.l.b16 %v232
    %v266 = vunpack.c.l.b16 %v233
    %v267 = vunpack.c.l.b16 %v234
    %v268 = vunpack.c.l.b16 %v235
    %v269 = vpack.c.b16 %v254, %v253
    %v270 = vpack.c.b16 %v256, %v255
    %v271 = vpack.c.b16 %v258, %v257
    %v272 = vpack.c.b16 %v260, %v259
    %v273 = vpack.c.b16 %v262, %v261
    %v274 = vpack.c.b16 %v264, %v263
    %v275 = vpack.c.b16 %v266, %v265
    %v276 = vpack.c.b16 %v268, %v267
    %285 = vmatpush.bf16.msra.mxu0 %v276
    %286 = vmatpush.bf16.msra.mxu0 %v275
    %287 = vmatpush.bf16.msra.mxu0 %v274
    %288 = vmatpush.bf16.msra.mxu0 %v273
    %289 = vmatpush.bf16.msra.mxu0 %v272
    %290 = vmatpush.bf16.msra.mxu0 %v271
    %291 = vmatpush.bf16.msra.mxu0 %v270
    %292 = vmatpush.bf16.msra.mxu0 %v269
    %293 = vmatmul.bf16.gmra.mxu0 %v219
    %v294 = vpop.f32.mrf.mxu0
    %v295 = vadd.f32 %v236, %v294
    %v296 = vpop.f32.mrf.mxu0
    %297 = vdwg.mxu0
    %v298 = vmax.f32 %v295, 0.0
    %v299 = vpack.c.bf16 %v298, %v298
    %v300 = vld [vmem:[#allocation10] sm:$0xf]
    %v301 = vld [vmem:[#allocation10 + $0x4] sm:$0xf]
    %v302 = vld [vmem:[#allocation10 + $0x8] sm:$0xf]
    %v303 = vld [vmem:[#allocation10 + $0xc] sm:$0xf]
    %v304 = vld [vmem:[#allocation10 + $0x10] sm:$0xf]
    %v305 = vld [vmem:[#allocation10 + $0x14] sm:$0xf]
    %v306 = vld [vmem:[#allocation10 + $0x18] sm:$0xf]
    %v307 = vld [vmem:[#allocation10 + $0x1c] sm:$0xf]
    %v308 = vld [vmem:[#allocation10 + $0x20] sm:$0xf]
    %v309 = vld [vmem:[#allocation10 + $0x24] sm:$0xf]
    %v310 = vld [vmem:[#allocation10 + $0x28] sm:$0xf]
    %v311 = vld [vmem:[#allocation10 + $0x2c] sm:$0xf]
    %v312 = vld [vmem:[#allocation10 + $0x30] sm:$0xf]
    %v313 = vld [vmem:[#allocation10 + $0x34] sm:$0xf]
    %v314 = vld [vmem:[#allocation10 + $0x38] sm:$0xf]
    %v315 = vld [vmem:[#allocation10 + $0x3c] sm:$0xf]
    %v316 = vperm.slane %v103, 3
    %v333 = vunpack.c.l.b16 %v300
    %v334 = vunpack.c.l.b16 %v301
    %v335 = vunpack.c.l.b16 %v302
    %v336 = vunpack.c.l.b16 %v303
    %v337 = vunpack.c.l.b16 %v304
    %v338 = vunpack.c.l.b16 %v305
    %v339 = vunpack.c.l.b16 %v306
    %v340 = vunpack.c.l.b16 %v307
    %v341 = vunpack.c.l.b16 %v308
    %v342 = vunpack.c.l.b16 %v309
    %v343 = vunpack.c.l.b16 %v310
    %v344 = vunpack.c.l.b16 %v311
    %v345 = vunpack.c.l.b16 %v312
    %v346 = vunpack.c.l.b16 %v313
    %v347 = vunpack.c.l.b16 %v314
    %v348 = vunpack.c.l.b16 %v315
    %v349 = vpack.c.b16 %v334, %v333
    %v350 = vpack.c.b16 %v336, %v335
    %v351 = vpack.c.b16 %v338, %v337
    %v352 = vpack.c.b16 %v340, %v339
    %v353 = vpack.c.b16 %v342, %v341
    %v354 = vpack.c.b16 %v344, %v343
    %v355 = vpack.c.b16 %v346, %v345
    %v356 = vpack.c.b16 %v348, %v347
    %365 = vmatpush.bf16.msra.mxu0 %v356
    %366 = vmatpush.bf16.msra.mxu0 %v355
    %367 = vmatpush.bf16.msra.mxu0 %v354
    %368 = vmatpush.bf16.msra.mxu0 %v353
    %369 = vmatpush.bf16.msra.mxu0 %v352
    %370 = vmatpush.bf16.msra.mxu0 %v351
    %371 = vmatpush.bf16.msra.mxu0 %v350
    %372 = vmatpush.bf16.msra.mxu0 %v349
    %373 = vmatmul.bf16.gmra.mxu0 %v299
    %v374 = vpop.f32.mrf.mxu0
    %v375 = vadd.f32 %v316, %v374
    %v376 = vpop.f32.mrf.mxu0
    %377 = vdwg.mxu0
    %v378 = vxor.u32 %v375, 2147483648
    %v379 = vmul.f32 %v378, 1.442695
    %v380 = vpow.pop %v379
    %v381 = vadd.f32 %v380, 1.0
    %v382 = vrcp.pop %v381
    %v383 = vmul.f32 %v381, %v382
    %v384 = vsub.f32 1.0, %v383
    %v385 = vmul.f32 %v382, %v384
    %v386 = vadd.f32 %v382, %v385
    %vm387 = vweird.f32 %v381
    %vm388 = vweird.f32 %v382
    %vm389 = vmor %vm387, %vm388
    %v390 = vsel %vm389, %v382, %v386
    %v391 = vand.u32 2147483647, %v381
    %vm392 = vcmp.eq.f32.partialorder %v391, 8.507059e+37
    %v393 = vand.u32 %v381, 2147483648
    %v394 = vor.u32 1.1754944e-38, %v393
    %v395 = vsel %vm392, %v394, %v390
    %v396 = vmul.f32 1.0, %v395
    %397 = vst [vmem:[#allocation11] sm:$0xff] %v396
    // Predicated region
    $region46: #{tpu_custom_call.1} parent=1 // pred_check
      _
    $region47: #{tpu_custom_call.1} parent=1 // pred_check_branch
      %399 = sbr.rel (0) target = $region49
    $region48: #{tpu_custom_call.1} parent=1 // pred_region
      %401 = vsyncadd [#allocation4], 0
      %s403 = sshll.u32 [#allocation11], 4
      %s404 = int_to_ptr.vmem [resolvable:$true] %s403
      %s405 = sshll.u32 %s6, 4
      %s406 = int_to_ptr.hbm [resolvable:$true] %s405
      %408 = dma.vmem_to_hbm [thread:$0]  %s404, 128, %s406, [#allocation4]
    $region49: #{tpu_custom_call.1} parent=1 // pred_fallthru
      _
    // Predicated region
    $region50: #{tpu_custom_call.1} parent=1 // pred_check
      _
    $region51: #{tpu_custom_call.1} parent=1 // pred_check_branch
      %410 = sbr.rel (0) target = $region53
    $region52: #{tpu_custom_call.1} parent=1 // pred_region
      %412 = dma.done [#allocation4], 128
    $region53: #{tpu_custom_call.1} parent=1 // pred_fallthru
      _
    %413 = vsyncpa [#allocation3], 1
    %414 = vsyncpa [#allocation6], 1
    %415 = vsyncpa [#allocation9], 1
    %416 = vsyncpa [#allocation4], 1

</llo_original>
